<compile_context>
chip_gen: v6e
topology: v6e:2x2x1
jax: 0.10.0
libtpu: 0.0.40
codegen_flags: <defaults>
</compile_context>

<pallas_src>
import functools

import jax
import jax.numpy as jnp
from jax.experimental import pallas as pl
from jax.experimental.pallas import tpu as pltpu


def _round_up(n, m):
    return ((n + m - 1) // m) * m


def _pad2d(a, rows, cols):
    return jnp.pad(a, ((0, rows - a.shape[0]), (0, cols - a.shape[1])))


def gru_cell_kernel(xh_ref, h_ref, w_ref, wnh_ref, b3_ref, out_ref, *,
                    hidden_pad, sub_rows):
    Hp = hidden_pad
    n_sub = xh_ref.shape[0] // sub_rows

    # Grid-invariant operands, loaded once per tile.
    w = w_ref[...]        # [I+Hp, 3*Hp] fused [z|r|n] weight (n-gate hidden rows zero)
    wnh = wnh_ref[...]    # [Hp, Hp]     hidden->n weight (applied to r*h)
    b3 = b3_ref[...]      # [1, 3*Hp]    fused bias, f32

    def body(c, carry):
        r0 = pl.multiple_of(c * sub_rows, 8)
        xh = xh_ref[pl.ds(r0, sub_rows), :]                        # matmul dtype
        h_f32 = h_ref[pl.ds(r0, sub_rows), :].astype(jnp.float32)  # f32 blend path

        # One wide MXU push for all three gates: [sub, 3*Hp] in f32.
        gates = jnp.dot(xh, w, preferred_element_type=jnp.float32) + b3

        # z_t, r_t = sigmoid(x@Wzx + h@Wzh + bz), sigmoid(x@Wrx + h@Wrh + br)
        zr = jax.nn.sigmoid(gates[:, :2 * Hp])
        z = zr[:, :Hp]
        r = zr[:, Hp:]

        # h_c = tanh(x@Wnx + (r*h)@Wnh + bn)  -- reset BEFORE the hidden matmul,
        # exactly as in the reference module.
        rh = (r * h_f32).astype(wnh.dtype)
        h_c = jnp.tanh(gates[:, 2 * Hp:]
                       + jnp.dot(rh, wnh, preferred_element_type=jnp.float32))

        # h_t = (1 - z) * h + z * h_c   (all elementwise in f32)
        out_ref[pl.ds(r0, sub_rows), :] = ((1.0 - z) * h_f32 + z * h_c).astype(out_ref.dtype)
        return carry

    jax.lax.fori_loop(0, n_sub, body, 0, unroll=True)


def prepare_gru_params(params, input_size, hidden_size, param_dtype=None):
    """Fuse/transpose/pad the PyTorch-layout weights ONCE (hoisted out of the step).

    params: dict with Wz/Wr/Wn of shape (hidden, input+hidden) (nn.Linear layout) and
    bz/br/bn of shape (hidden,).  param_dtype: optional matmul-input dtype (bf16 is
    recommended on v6e/v7x); accumulation and elementwise math stay f32.
    """
    w_dtype = (jnp.dtype(param_dtype) if param_dtype is not None
               else jnp.dtype(params["Wz"].dtype))
    Hp = _round_up(hidden_size, 128)          # lane-dense per-gate width

    def split(W):
        Wt = W.T.astype(w_dtype)              # (input+hidden, hidden)
        return Wt[:input_size, :], Wt[input_size:, :]

    wzx, wzh = split(params["Wz"])
    wrx, wrh = split(params["Wr"])
    wnx, wnh = split(params["Wn"])

    def gate_col(wx, wh):
        return jnp.concatenate([_pad2d(wx, input_size, Hp), _pad2d(wh, Hp, Hp)], axis=0)

    # Fused [I+Hp, 3*Hp] weight; n-gate hidden block is zero (handled by (r*h)@Wnh).
    w = jnp.concatenate(
        [gate_col(wzx, wzh),
         gate_col(wrx, wrh),
         jnp.concatenate([_pad2d(wnx, input_size, Hp),
                          jnp.zeros((Hp, Hp), w_dtype)], axis=0)],
        axis=1)
    w_nh = _pad2d(wnh, Hp, Hp)

    pad_b = lambda b: jnp.pad(b.astype(jnp.float32), (0, Hp - hidden_size))
    b3 = jnp.concatenate(
        [pad_b(params["bz"]), pad_b(params["br"]), pad_b(params["bn"])]
    ).reshape(1, 3 * Hp)

    return dict(w=w, w_nh=w_nh, b3=b3, input_size=input_size,
                hidden_size=hidden_size, hidden_pad=Hp, w_dtype=w_dtype)


def gru_cell_pallas(x, h, prepared, *, block_b=256):
    """One GRU cell step using weights packed by prepare_gru_params."""
    B, input_size = x.shape
    assert input_size == prepared["input_size"]
    hidden_size = prepared["hidden_size"]
    Hp = prepared["hidden_pad"]
    w_dtype = prepared["w_dtype"]
    out_dtype = x.dtype
    K = input_size + Hp

    # ---- batch tiling: >=2 (even) tiles when possible (v7x dual TC), bounded padding ----
    B8 = _round_up(B, 8)
    n_tiles = max(1, pl.cdiv(B8, _round_up(block_b, 8)))
    if B8 >= 16:
        n_tiles = max(n_tiles, 2)
    if n_tiles > 1 and n_tiles % 2:
        n_tiles += 1
    TB = _round_up(pl.cdiv(B8, n_tiles), 8)
    B_pad = TB * n_tiles

    # Intra-tile sub-chunking: overlap sub-chunk i's EUP/VPU tail with i+1's MXU push.
    if TB >= 128 and TB % 32 == 0:
        sub_rows = TB // 4
    elif TB >= 64 and TB % 16 == 0:
        sub_rows = TB // 2
    else:
        sub_rows = TB

    # ---- per-step activation packing (plain-JAX glue) ----
    xh = jnp.concatenate(
        [x.astype(w_dtype), _pad2d(h.astype(w_dtype), B, Hp)], axis=-1)  # [B, I+Hp]
    xh = _pad2d(xh, B_pad, K)
    hp = _pad2d(h, B_pad, Hp)        # original dtype, used for the f32 blend path

    # ---- VMEM budget: weights single-buffered, activations double-buffered, plus the
    #      f32 gate intermediates; capped by the device capacity minus ~8 MiB headroom ----
    w_bytes = (prepared["w"].size * prepared["w"].dtype.itemsize
               + prepared["w_nh"].size * prepared["w_nh"].dtype.itemsize
               + prepared["b3"].size * 4)
    act_bytes = 2 * TB * (K * w_dtype.itemsize
                          + Hp * hp.dtype.itemsize
                          + Hp * jnp.dtype(out_dtype).itemsize)
    interm_bytes = sub_rows * 8 * Hp * 4
    needed = w_bytes + act_bytes + interm_bytes
    try:
        cap = int(pltpu.get_tpu_info().vmem_capacity_bytes)
    except Exception:
        cap = 64 << 20                     # conservative (v7x-sized) fallback
    vmem_limit = int(min(cap - (8 << 20), max(2 * needed, 32 << 20)))

    kernel = functools.partial(gru_cell_kernel, hidden_pad=Hp, sub_rows=sub_rows)

    def build(single_buffer_weights):
        resident = ({"pipeline_mode": pl.Buffered(1)} if single_buffer_weights else {})
        return pl.pallas_call(
            kernel,
            out_shape=jax.ShapeDtypeStruct((B_pad, Hp), out_dtype),
            grid=(n_tiles,),
            in_specs=[
                pl.BlockSpec((TB, K), lambda i: (i, 0)),                     # [x|h] tile
                pl.BlockSpec((TB, Hp), lambda i: (i, 0)),                    # h tile (f32 path)
                pl.BlockSpec((K, 3 * Hp), lambda i: (0, 0), **resident),     # fused W (resident)
                pl.BlockSpec((Hp, Hp), lambda i: (0, 0), **resident),        # Wnh (resident)
                pl.BlockSpec((1, 3 * Hp), lambda i: (0, 0), **resident),     # fused bias
            ],
            out_specs=pl.BlockSpec((TB, Hp), lambda i: (i, 0)),
            compiler_params=pltpu.CompilerParams(
                dimension_semantics=("parallel",),   # batch tiles -> megacore / dual TC
                vmem_limit_bytes=vmem_limit,
            ),
        )

    args = (xh, hp, prepared["w"], prepared["w_nh"], prepared["b3"])
    try:
        out_padded = build(True)(*args)
    except Exception:
        # Fallback if this jax build rejects Buffered(1) single-buffering.
        out_padded = build(False)(*args)

    return out_padded[:B, :hidden_size]


def gru_cell_ref(x, h, params):
    """Pure-JAX reference matching the PyTorch module exactly."""
    combined = jnp.concatenate([x, h], axis=-1)
    z = jax.nn.sigmoid(combined @ params["Wz"].T + params["bz"])
    r = jax.nn.sigmoid(combined @ params["Wr"].T + params["br"])
    combined2 = jnp.concatenate([x, r * h], axis=-1)
    h_c = jnp.tanh(combined2 @ params["Wn"].T + params["bn"])
    return (1.0 - z) * h + z * h_c


if __name__ == "__main__":
    B = 2
    input_size = 16
    hidden_size = 32
    combined_size = input_size + hidden_size

    key = jax.random.PRNGKey(0)
    keys = jax.random.split(key, 8)
    stdv = 1.0 / jnp.sqrt(jnp.float32(hidden_size))

    params = {
        "Wz": jax.random.uniform(keys[0], (hidden_size, combined_size),
                                 jnp.float32, -stdv, stdv),
        "bz": jax.random.uniform(keys[1], (hidden_size,), jnp.float32, -stdv, stdv),
        "Wr": jax.random.uniform(keys[2], (hidden_size, combined_size),
                                 jnp.float32, -stdv, stdv),
        "br": jax.random.uniform(keys[3], (hidden_size,), jnp.float32, -stdv, stdv),
        "Wn": jax.random.uniform(keys[4], (hidden_size, combined_size),
                                 jnp.float32, -stdv, stdv),
        "bn": jax.random.uniform(keys[5], (hidden_size,), jnp.float32, -stdv, stdv),
    }

    x = jax.random.normal(keys[6], (B, input_size), jnp.float32)
    h = jax.random.normal(keys[7], (B, hidden_size), jnp.float32)

    ref = gru_cell_ref(x, h, params)

    # f32 path (exact vs reference); weights packed once, reused across steps.
    prep_f32 = prepare_gru_params(params, input_size, hidden_size)
    out = gru_cell_pallas(x, h, prep_f32)
    jax.block_until_ready(out)
    assert out.shape == (B, hidden_size)
    assert jnp.allclose(out, ref, atol=1e-5, rtol=1e-5), "f32 mismatch vs JAX reference"

    # bf16 matmul-input path (recommended on v6e/v7x: MXU rate + half the weight bytes),
    # f32 accumulation and f32 elementwise.  Note: inputs are quantized too, not just weights.
    prep_bf16 = prepare_gru_params(params, input_size, hidden_size,
                                   param_dtype=jnp.bfloat16)
    out_bf16 = gru_cell_pallas(x, h, prep_bf16)
    jax.block_until_ready(out_bf16)
    assert jnp.allclose(out_bf16, ref, atol=3e-2, rtol=3e-2), "bf16 mismatch vs reference"

    # hidden=None case in the PyTorch forward => zero initial state
    h0 = jnp.zeros((B, hidden_size), jnp.float32)
    out0 = gru_cell_pallas(x, h0, prep_f32)
    jax.block_until_ready(out0)
    assert jnp.allclose(out0, gru_cell_ref(x, h0, params), atol=1e-5, rtol=1e-5)

    print("KERNEL_OK")
</pallas_src>

<mosaic_0001>
module attributes {stable_mosaic.version = 11 : i64} {
  func.func @gru_cell_kernel(%arg0: i32, %arg1: memref<8x144xf32, #tpu.memory_space<vmem>>, %arg2: memref<8x128xf32, #tpu.memory_space<vmem>>, %arg3: memref<144x384xf32, #tpu.memory_space<vmem>>, %arg4: memref<128x128xf32, #tpu.memory_space<vmem>>, %arg5: memref<1x384xf32, #tpu.memory_space<vmem>>, %arg6: memref<8x128xf32, #tpu.memory_space<vmem>>) attributes {dimension_semantics = [#tpu.dimension_semantics<parallel>], iteration_bounds = array<i64: 1>, scalar_prefetch = 0 : i64, scratch_operands = 0 : i64, tpu.core_type = #tpu.core_type<tc>, window_params = [{transform_indices = @transform_0, window_bounds = array<i64: 8, 144>}, {transform_indices = @transform_1, window_bounds = array<i64: 8, 128>}, {pipeline_mode = #tpu.pipeline_mode<synchronous>, transform_indices = @transform_2, window_bounds = array<i64: 144, 384>}, {pipeline_mode = #tpu.pipeline_mode<synchronous>, transform_indices = @transform_3, window_bounds = array<i64: 128, 128>}, {pipeline_mode = #tpu.pipeline_mode<synchronous>, transform_indices = @transform_4, window_bounds = array<i64: 1, 384>}, {transform_indices = @transform_5, window_bounds = array<i64: 8, 128>}]} {
    %c0 = arith.constant 0 : index
    %c0_0 = arith.constant 0 : index
    %0 = vector.load %arg3[%c0, %c0_0] : memref<144x384xf32, #tpu.memory_space<vmem>>, vector<144x384xf32>
    %c0_1 = arith.constant 0 : index
    %c0_2 = arith.constant 0 : index
    %1 = vector.load %arg4[%c0_1, %c0_2] : memref<128x128xf32, #tpu.memory_space<vmem>>, vector<128x128xf32>
    %c0_3 = arith.constant 0 : index
    %c0_4 = arith.constant 0 : index
    %2 = vector.load %arg5[%c0_3, %c0_4] : memref<1x384xf32, #tpu.memory_space<vmem>>, vector<1x384xf32>
    %c0_i32 = arith.constant 0 : i32
    %c8_i32 = arith.constant 8 : i32
    %3 = arith.muli %c0_i32, %c8_i32 : i32
    %4 = tpu.assume_multiple %3, 8 : i32
    %5 = arith.index_cast %4 : i32 to index
    %c0_5 = arith.constant 0 : index
    %6 = vector.load %arg1[%5, %c0_5] : memref<8x144xf32, #tpu.memory_space<vmem>>, vector<8x144xf32>
    %7 = arith.index_cast %4 : i32 to index
    %c0_6 = arith.constant 0 : index
    %8 = vector.load %arg2[%7, %c0_6] : memref<8x128xf32, #tpu.memory_space<vmem>>, vector<8x128xf32>
    %cst = arith.constant dense<0.000000e+00> : vector<8x384xf32>
    %9 = tpu.matmul %6, %0, %cst {dimension_numbers = #tpu.dot_dimension_numbers<[1], [0], [0], [1], [0, 0, 1, 1], [], []>} : vector<8x144xf32>, vector<144x384xf32>, vector<8x384xf32> -> vector<8x384xf32>
    %10 = vector.broadcast %2 : vector<1x384xf32> to vector<8x384xf32>
    %11 = arith.addf %9, %10 : vector<8x384xf32>
    %12 = vector.extract_strided_slice %11 {offsets = [0, 0], sizes = [8, 256], strides = [1, 1]} : vector<8x384xf32> to vector<8x256xf32>
    %13 = arith.negf %12 : vector<8x256xf32>
    %14 = math.exp %13 : vector<8x256xf32>
    %cst_7 = arith.constant 1.000000e+00 : f32
    %15 = vector.broadcast %cst_7 : f32 to vector<8x256xf32>
    %16 = arith.addf %15, %14 : vector<8x256xf32>
    %17 = arith.divf %15, %16 : vector<8x256xf32>
    %18 = vector.extract_strided_slice %17 {offsets = [0, 0], sizes = [8, 128], strides = [1, 1]} : vector<8x256xf32> to vector<8x128xf32>
    %19 = vector.extract_strided_slice %17 {offsets = [0, 128], sizes = [8, 128], strides = [1, 1]} : vector<8x256xf32> to vector<8x128xf32>
    %20 = arith.mulf %19, %8 : vector<8x128xf32>
    %21 = vector.extract_strided_slice %11 {offsets = [0, 256], sizes = [8, 128], strides = [1, 1]} : vector<8x384xf32> to vector<8x128xf32>
    %cst_8 = arith.constant dense<0.000000e+00> : vector<8x128xf32>
    %22 = tpu.matmul %20, %1, %cst_8 {dimension_numbers = #tpu.dot_dimension_numbers<[1], [0], [0], [1], [0, 0, 1, 1], [], []>} : vector<8x128xf32>, vector<128x128xf32>, vector<8x128xf32> -> vector<8x128xf32>
    %23 = arith.addf %21, %22 : vector<8x128xf32>
    %24 = math.tanh %23 : vector<8x128xf32>
    %cst_9 = arith.constant 1.000000e+00 : f32
    %25 = vector.broadcast %cst_9 : f32 to vector<8x128xf32>
    %26 = arith.subf %25, %18 : vector<8x128xf32>
    %27 = arith.mulf %26, %8 : vector<8x128xf32>
    %28 = arith.mulf %18, %24 : vector<8x128xf32>
    %29 = arith.addf %27, %28 : vector<8x128xf32>
    %30 = arith.index_cast %4 : i32 to index
    %c0_10 = arith.constant 0 : index
    %31 = vector.load %arg6[%30, %c0_10] : memref<8x128xf32, #tpu.memory_space<vmem>>, vector<8x128xf32>
    tpu.vector_store %arg6[%30, %c0_10], %29 {strides = array<i32>} : memref<8x128xf32, #tpu.memory_space<vmem>>, vector<8x128xf32>,
    %c1_i32 = arith.constant 1 : i32
    return
  }
  func.func @transform_0(%arg0: i32) -> (i32, i32) {
    %c0_i32 = arith.constant 0 : i32
    %c0_i32_0 = arith.constant 0 : i32
    return %arg0, %c0_i32 : i32, i32
  }
  func.func @transform_1(%arg0: i32) -> (i32, i32) {
    %c0_i32 = arith.constant 0 : i32
    %c0_i32_0 = arith.constant 0 : i32
    return %arg0, %c0_i32 : i32, i32
  }
  func.func @transform_2(%arg0: i32) -> (i32, i32) {
    %c0_i32 = arith.constant 0 : i32
    %c0_i32_0 = arith.constant 0 : i32
    %c0_i32_1 = arith.constant 0 : i32
    return %c0_i32, %c0_i32_0 : i32, i32
  }
  func.func @transform_3(%arg0: i32) -> (i32, i32) {
    %c0_i32 = arith.constant 0 : i32
    %c0_i32_0 = arith.constant 0 : i32
    %c0_i32_1 = arith.constant 0 : i32
    return %c0_i32, %c0_i32_0 : i32, i32
  }
  func.func @transform_4(%arg0: i32) -> (i32, i32) {
    %c0_i32 = arith.constant 0 : i32
    %c0_i32_0 = arith.constant 0 : i32
    %c0_i32_1 = arith.constant 0 : i32
    return %c0_i32, %c0_i32_0 : i32, i32
  }
  func.func @transform_5(%arg0: i32) -> (i32, i32) {
    %c0_i32 = arith.constant 0 : i32
    %c0_i32_0 = arith.constant 0 : i32
    return %arg0, %c0_i32 : i32, i32
  }
}

module attributes {stable_mosaic.version = 11 : i64} {
  func.func @gru_cell_kernel(%arg0: i32, %arg1: memref<8x144xf32, #tpu.memory_space<vmem>>, %arg2: memref<8x128xf32, #tpu.memory_space<vmem>>, %arg3: memref<144x384xf32, #tpu.memory_space<vmem>>, %arg4: memref<128x128xf32, #tpu.memory_space<vmem>>, %arg5: memref<1x384xf32, #tpu.memory_space<vmem>>, %arg6: memref<8x128xf32, #tpu.memory_space<vmem>>) attributes {dimension_semantics = [#tpu.dimension_semantics<parallel>], iteration_bounds = array<i64: 1>, scalar_prefetch = 0 : i64, scratch_operands = 0 : i64, tpu.core_type = #tpu.core_type<tc>, window_params = [{transform_indices = @transform_0, window_bounds = array<i64: 8, 144>}, {transform_indices = @transform_1, window_bounds = array<i64: 8, 128>}, {pipeline_mode = #tpu.pipeline_mode<synchronous>, transform_indices = @transform_2, window_bounds = array<i64: 144, 384>}, {pipeline_mode = #tpu.pipeline_mode<synchronous>, transform_indices = @transform_3, window_bounds = array<i64: 128, 128>}, {pipeline_mode = #tpu.pipeline_mode<synchronous>, transform_indices = @transform_4, window_bounds = array<i64: 1, 384>}, {transform_indices = @transform_5, window_bounds = array<i64: 8, 128>}]} {
    %c0 = arith.constant 0 : index
    %c0_0 = arith.constant 0 : index
    %0 = vector.load %arg3[%c0, %c0_0] : memref<144x384xf32, #tpu.memory_space<vmem>>, vector<144x384xf32>
    %c0_1 = arith.constant 0 : index
    %c0_2 = arith.constant 0 : index
    %1 = vector.load %arg4[%c0_1, %c0_2] : memref<128x128xf32, #tpu.memory_space<vmem>>, vector<128x128xf32>
    %c0_3 = arith.constant 0 : index
    %c0_4 = arith.constant 0 : index
    %2 = vector.load %arg5[%c0_3, %c0_4] : memref<1x384xf32, #tpu.memory_space<vmem>>, vector<1x384xf32>
    %c0_i32 = arith.constant 0 : i32
    %c8_i32 = arith.constant 8 : i32
    %3 = arith.muli %c0_i32, %c8_i32 : i32
    %4 = tpu.assume_multiple %3, 8 : i32
    %5 = arith.index_cast %4 : i32 to index
    %c0_5 = arith.constant 0 : index
    %6 = vector.load %arg1[%5, %c0_5] : memref<8x144xf32, #tpu.memory_space<vmem>>, vector<8x144xf32>
    %7 = arith.index_cast %4 : i32 to index
    %c0_6 = arith.constant 0 : index
    %8 = vector.load %arg2[%7, %c0_6] : memref<8x128xf32, #tpu.memory_space<vmem>>, vector<8x128xf32>
    %cst = arith.constant dense<0.000000e+00> : vector<8x384xf32>
    %9 = tpu.matmul %6, %0, %cst {dimension_numbers = #tpu.dot_dimension_numbers<[1], [0], [0], [1], [0, 0, 1, 1], [], []>} : vector<8x144xf32>, vector<144x384xf32>, vector<8x384xf32> -> vector<8x384xf32>
    %10 = vector.broadcast %2 : vector<1x384xf32> to vector<8x384xf32>
    %11 = arith.addf %9, %10 : vector<8x384xf32>
    %12 = vector.extract_strided_slice %11 {offsets = [0, 0], sizes = [8, 256], strides = [1, 1]} : vector<8x384xf32> to vector<8x256xf32>
    %13 = arith.negf %12 : vector<8x256xf32>
    %14 = math.exp %13 : vector<8x256xf32>
    %cst_7 = arith.constant 1.000000e+00 : f32
    %15 = vector.broadcast %cst_7 : f32 to vector<8x256xf32>
    %16 = arith.addf %15, %14 : vector<8x256xf32>
    %17 = arith.divf %15, %16 : vector<8x256xf32>
    %18 = vector.extract_strided_slice %17 {offsets = [0, 0], sizes = [8, 128], strides = [1, 1]} : vector<8x256xf32> to vector<8x128xf32>
    %19 = vector.extract_strided_slice %17 {offsets = [0, 128], sizes = [8, 128], strides = [1, 1]} : vector<8x256xf32> to vector<8x128xf32>
    %20 = arith.mulf %19, %8 : vector<8x128xf32>
    %21 = vector.extract_strided_slice %11 {offsets = [0, 256], sizes = [8, 128], strides = [1, 1]} : vector<8x384xf32> to vector<8x128xf32>
    %cst_8 = arith.constant dense<0.000000e+00> : vector<8x128xf32>
    %22 = tpu.matmul %20, %1, %cst_8 {dimension_numbers = #tpu.dot_dimension_numbers<[1], [0], [0], [1], [0, 0, 1, 1], [], []>} : vector<8x128xf32>, vector<128x128xf32>, vector<8x128xf32> -> vector<8x128xf32>
    %23 = arith.addf %21, %22 : vector<8x128xf32>
    %24 = math.tanh %23 : vector<8x128xf32>
    %cst_9 = arith.constant 1.000000e+00 : f32
    %25 = vector.broadcast %cst_9 : f32 to vector<8x128xf32>
    %26 = arith.subf %25, %18 : vector<8x128xf32>
    %27 = arith.mulf %26, %8 : vector<8x128xf32>
    %28 = arith.mulf %18, %24 : vector<8x128xf32>
    %29 = arith.addf %27, %28 : vector<8x128xf32>
    %30 = arith.index_cast %4 : i32 to index
    %c0_10 = arith.constant 0 : index
    %31 = vector.load %arg6[%30, %c0_10] : memref<8x128xf32, #tpu.memory_space<vmem>>, vector<8x128xf32>
    tpu.vector_store %arg6[%30, %c0_10], %29 {strides = array<i32>} : memref<8x128xf32, #tpu.memory_space<vmem>>, vector<8x128xf32>,
    %c1_i32 = arith.constant 1 : i32
    return
  }
  func.func @transform_0(%arg0: i32) -> (i32, i32) {
    %c0_i32 = arith.constant 0 : i32
    %c0_i32_0 = arith.constant 0 : i32
    return %arg0, %c0_i32 : i32, i32
  }
  func.func @transform_1(%arg0: i32) -> (i32, i32) {
    %c0_i32 = arith.constant 0 : i32
    %c0_i32_0 = arith.constant 0 : i32
    return %arg0, %c0_i32 : i32, i32
  }
  func.func @transform_2(%arg0: i32) -> (i32, i32) {
    %c0_i32 = arith.constant 0 : i32
    %c0_i32_0 = arith.constant 0 : i32
    %c0_i32_1 = arith.constant 0 : i32
    return %c0_i32, %c0_i32_0 : i32, i32
  }
  func.func @transform_3(%arg0: i32) -> (i32, i32) {
    %c0_i32 = arith.constant 0 : i32
    %c0_i32_0 = arith.constant 0 : i32
    %c0_i32_1 = arith.constant 0 : i32
    return %c0_i32, %c0_i32_0 : i32, i32
  }
  func.func @transform_4(%arg0: i32) -> (i32, i32) {
    %c0_i32 = arith.constant 0 : i32
    %c0_i32_0 = arith.constant 0 : i32
    %c0_i32_1 = arith.constant 0 : i32
    return %c0_i32, %c0_i32_0 : i32, i32
  }
  func.func @transform_5(%arg0: i32) -> (i32, i32) {
    %c0_i32 = arith.constant 0 : i32
    %c0_i32_0 = arith.constant 0 : i32
    return %arg0, %c0_i32 : i32, i32
  }
}

</mosaic_0001>

<llo_original>
// kernel: tpu_custom_call.1
$region0: #{tpu_custom_call.1}
  #allocation0 [shape = 'u32[]', space=smem, size = 0x4, offset = 0x4, fixed_abs, tag = 'smem constant byte address 0x4 - core index']
  #allocation1 [shape = 'u32[144,128]{1,0:T(1,128)}', space=vmem, size = 0x12000, scoped, tag = 'internal scratch']
  %s0 = inlined_call_operand.hbm [shape: f32[8,144], index: 0, kind: input, shape index: {}]
  %s1 = inlined_call_operand.hbm [shape: f32[8,128], index: 1, kind: input, shape index: {}]
  %s2 = inlined_call_operand.hbm [shape: f32[144,384], index: 2, kind: input, shape index: {}]
  %s3 = inlined_call_operand.hbm [shape: f32[128,128], index: 3, kind: input, shape index: {}]
  %s4 = inlined_call_operand.vmem [shape: f32[1,384], index: 4, kind: input, shape index: {}]
  %s5 = inlined_call_operand.hbm [shape: f32[8,128], index: 5, kind: output, shape index: {}]
  %s6 = sld [smem:[#allocation0]]
  $region46: #{tpu_custom_call.1} parent=0
    _
  %s8 = ssub.s32 1, %s6
  %s9 = scalar_select 0, %s8, %s6
  $region1: #{tpu_custom_call.1} parent=0
    #allocation2 [shape = 'u8[8192]{0}', space=vmem, size = 0x2000, scoped, tag = 'input window, operand 0, single buffered']
    #allocation3 [shape = 's32[1]{0}', space=sflag, size = 0x4, scoped, tag = 'scoped memory for tpu_custom_call.1']
    #allocation4 [shape = 's32[1]{0}', space=sflag, size = 0x4, scoped, tag = 'scoped memory for tpu_custom_call.1']
    #allocation5 [shape = 'u8[4096]{0}', space=vmem, size = 0x1000, scoped, tag = 'input window, operand 1, single buffered']
    #allocation6 [shape = 's32[1]{0}', space=sflag, size = 0x4, scoped, tag = 'scoped memory for tpu_custom_call.1']
    #allocation7 [shape = 'u8[221184]{0}', space=vmem, size = 0x36000, scoped, tag = 'input window, operand 2, single buffered']
    #allocation8 [shape = 'u8[65536]{0}', space=vmem, size = 0x10000, scoped, tag = 'input window, operand 3, single buffered']
    #allocation9 [shape = 's32[1]{0}', space=sflag, size = 0x4, scoped, tag = 'scoped memory for tpu_custom_call.1']
    #allocation10 [shape = 'u8[4096]{0}', space=vmem, size = 0x1000, scoped, tag = 'output window, operand 0, single buffered']
    %10 = vsyncpa [#allocation3], 0
    %11 = vsyncpa [#allocation6], 0
    %12 = vsyncpa [#allocation9], 0
    %13 = vsyncpa [#allocation4], 0
    // Predicated region
    $region2: #{tpu_custom_call.1} parent=1 // pred_check
      _
    $region3: #{tpu_custom_call.1} parent=1 // pred_check_branch
      %15 = sbr.rel (0) target = $region5
    $region4: #{tpu_custom_call.1} parent=1 // pred_region
      %s17 = ssub.s32 256, 256
      %18 = vsyncadd [#allocation3], %s17
      %s20 = sshll.u32 [#allocation2], 4
      %s21 = int_to_ptr.vmem [resolvable:$true] %s20
      %23 = dma.hbm_to_vmem [thread:$0]  %s0, 256, %s21, [#allocation3]
    $region5: #{tpu_custom_call.1} parent=1 // pred_fallthru
      _
    // Predicated region
    $region6: #{tpu_custom_call.1} parent=1 // pred_check
      _
    $region7: #{tpu_custom_call.1} parent=1 // pred_check_branch
      %25 = sbr.rel (0) target = $region9
    $region8: #{tpu_custom_call.1} parent=1 // pred_region
      %s27 = ssub.s32 128, 128
      %28 = vsyncadd [#allocation6], %s27
      %s30 = sshll.u32 [#allocation5], 4
      %s31 = int_to_ptr.vmem [resolvable:$true] %s30
      %33 = dma.hbm_to_vmem [thread:$0]  %s1, 128, %s31, [#allocation6]
    $region9: #{tpu_custom_call.1} parent=1 // pred_fallthru
      _
    // Predicated region
    $region10: #{tpu_custom_call.1} parent=1 // pred_check
      _
    $region11: #{tpu_custom_call.1} parent=1 // pred_check_branch
      %35 = sbr.rel (0) target = $region13
    $region12: #{tpu_custom_call.1} parent=1 // pred_region
      %s37 = ssub.s32 6912, 6912
      %38 = vsyncadd [#allocation6], %s37
      %s39 = sshll.u32 [#allocation7], 4
      %s40 = int_to_ptr.vmem [resolvable:$true] %s39
      %45 = dma.hbm_to_vmem [thread:$0]  %s2, 6912, %s40, [#allocation6], 384, 384, 24
    $region13: #{tpu_custom_call.1} parent=1 // pred_fallthru
      _
    // Predicated region
    $region14: #{tpu_custom_call.1} parent=1 // pred_check
      _
    $region15: #{tpu_custom_call.1} parent=1 // pred_check_branch
      %47 = sbr.rel (0) target = $region17
    $region16: #{tpu_custom_call.1} parent=1 // pred_region
      %s49 = ssub.s32 2048, 2048
      %50 = vsyncadd [#allocation9], %s49
      %s51 = sshll.u32 [#allocation8], 4
      %s52 = int_to_ptr.vmem [resolvable:$true] %s51
      %57 = dma.hbm_to_vmem [thread:$0]  %s3, 2048, %s52, [#allocation9], 128, 128, 8
    $region17: #{tpu_custom_call.1} parent=1 // pred_fallthru
      _
    // Predicated region
    $region18: #{tpu_custom_call.1} parent=1 // pred_check
      _
    $region19: #{tpu_custom_call.1} parent=1 // pred_check_branch
      %59 = sbr.rel (0) target = $region21
    $region20: #{tpu_custom_call.1} parent=1 // pred_region
      _
    $region21: #{tpu_custom_call.1} parent=1 // pred_fallthru
      _
    // Predicated region
    $region22: #{tpu_custom_call.1} parent=1 // pred_check
      _
    $region23: #{tpu_custom_call.1} parent=1 // pred_check_branch
      %61 = sbr.rel (0) target = $region25
    $region24: #{tpu_custom_call.1} parent=1 // pred_region
      %62 = dma.done [#allocation3], 256
    $region25: #{tpu_custom_call.1} parent=1 // pred_fallthru
      _
    // Predicated region
    $region26: #{tpu_custom_call.1} parent=1 // pred_check
      _
    $region27: #{tpu_custom_call.1} parent=1 // pred_check_branch
      %64 = sbr.rel (0) target = $region29
    $region28: #{tpu_custom_call.1} parent=1 // pred_region
      %65 = dma.done [#allocation6], 128
    $region29: #{tpu_custom_call.1} parent=1 // pred_fallthru
      _
    // Predicated region
    $region30: #{tpu_custom_call.1} parent=1 // pred_check
      _
    $region31: #{tpu_custom_call.1} parent=1 // pred_check_branch
      %67 = sbr.rel (0) target = $region33
    $region32: #{tpu_custom_call.1} parent=1 // pred_region
      %68 = dma.done [#allocation6], 6912
    $region33: #{tpu_custom_call.1} parent=1 // pred_fallthru
      _
    // Predicated region
    $region34: #{tpu_custom_call.1} parent=1 // pred_check
      _
    $region35: #{tpu_custom_call.1} parent=1 // pred_check_branch
      %70 = sbr.rel (0) target = $region37
    $region36: #{tpu_custom_call.1} parent=1 // pred_region
      %71 = dma.done [#allocation9], 2048
    $region37: #{tpu_custom_call.1} parent=1 // pred_fallthru
      _
    %v72 = vld [vmem:[#allocation7] sm:$0xff]
    %v73 = vld [vmem:[#allocation7 + $0x8] sm:$0xff]
    %v74 = vld [vmem:[#allocation7 + $0x10] sm:$0xff]
    %v75 = vld [vmem:[#allocation7 + $0x18] sm:$0xff]
    %v76 = vld [vmem:[#allocation7 + $0x20] sm:$0xff]
    %v77 = vld [vmem:[#allocation7 + $0x28] sm:$0xff]
    %v78 = vld [vmem:[#allocation7 + $0x30] sm:$0xff]
    %v79 = vld [vmem:[#allocation7 + $0x38] sm:$0xff]
    %v80 = vld [vmem:[#allocation7 + $0x40] sm:$0xff]
    %v81 = vld [vmem:[#allocation7 + $0x48] sm:$0xff]
    %v82 = vld [vmem:[#allocation7 + $0x50] sm:$0xff]
    %v83 = vld [vmem:[#allocation7 + $0x58] sm:$0xff]
    %v84 = vld [vmem:[#allocation7 + $0x60] sm:$0xff]
    %v85 = vld [vmem:[#allocation7 + $0x68] sm:$0xff]
    %v86 = vld [vmem:[#allocation7 + $0x70] sm:$0xff]
    %v87 = vld [vmem:[#allocation7 + $0x78] sm:$0xff]
    %v88 = vld [vmem:[#allocation7 + $0x80] sm:$0xff]
    %v89 = vld [vmem:[#allocation7 + $0x88] sm:$0xff]
    %v90 = vld [vmem:[#allocation7 + $0x90] sm:$0xff]
    %v91 = vld [vmem:[#allocation7 + $0x98] sm:$0xff]
    %v92 = vld [vmem:[#allocation7 + $0xa0] sm:$0xff]
    %v93 = vld [vmem:[#allocation7 + $0xa8] sm:$0xff]
    %v94 = vld [vmem:[#allocation7 + $0xb0] sm:$0xff]
    %v95 = vld [vmem:[#allocation7 + $0xb8] sm:$0xff]
    %v96 = vld [vmem:[#allocation7 + $0xc0] sm:$0xff]
    %v97 = vld [vmem:[#allocation7 + $0xc8] sm:$0xff]
    %v98 = vld [vmem:[#allocation7 + $0xd0] sm:$0xff]
    %v99 = vld [vmem:[#allocation7 + $0xd8] sm:$0xff]
    %v100 = vld [vmem:[#allocation7 + $0xe0] sm:$0xff]
    %v101 = vld [vmem:[#allocation7 + $0xe8] sm:$0xff]
    %v102 = vld [vmem:[#allocation7 + $0xf0] sm:$0xff]
    %v103 = vld [vmem:[#allocation7 + $0xf8] sm:$0xff]
    %v104 = vld [vmem:[#allocation7 + $0x100] sm:$0xff]
    %v105 = vld [vmem:[#allocation7 + $0x108] sm:$0xff]
    %v106 = vld [vmem:[#allocation7 + $0x110] sm:$0xff]
    %v107 = vld [vmem:[#allocation7 + $0x118] sm:$0xff]
    %v108 = vld [vmem:[#allocation7 + $0x120] sm:$0xff]
    %v109 = vld [vmem:[#allocation7 + $0x128] sm:$0xff]
    %v110 = vld [vmem:[#allocation7 + $0x130] sm:$0xff]
    %v111 = vld [vmem:[#allocation7 + $0x138] sm:$0xff]
    %v112 = vld [vmem:[#allocation7 + $0x140] sm:$0xff]
    %v113 = vld [vmem:[#allocation7 + $0x148] sm:$0xff]
    %v114 = vld [vmem:[#allocation7 + $0x150] sm:$0xff]
    %v115 = vld [vmem:[#allocation7 + $0x158] sm:$0xff]
    %v116 = vld [vmem:[#allocation7 + $0x160] sm:$0xff]
    %v117 = vld [vmem:[#allocation7 + $0x168] sm:$0xff]
    %v118 = vld [vmem:[#allocation7 + $0x170] sm:$0xff]
    %v119 = vld [vmem:[#allocation7 + $0x178] sm:$0xff]
    %v120 = vld [vmem:[#allocation7 + $0x180] sm:$0xff]
    %v121 = vld [vmem:[#allocation7 + $0x188] sm:$0xff]
    %v122 = vld [vmem:[#allocation7 + $0x190] sm:$0xff]
    %v123 = vld [vmem:[#allocation7 + $0x198] sm:$0xff]
    %v124 = vld [vmem:[#allocation7 + $0x1a0] sm:$0xff]
    %v125 = vld [vmem:[#allocation7 + $0x1a8] sm:$0xff]
    %v126 = vld [vmem:[#allocation8] sm:$0xff]
    %v127 = vld [vmem:[#allocation8 + $0x8] sm:$0xff]
    %v128 = vld [vmem:[#allocation8 + $0x10] sm:$0xff]
    %v129 = vld [vmem:[#allocation8 + $0x18] sm:$0xff]
    %v130 = vld [vmem:[#allocation8 + $0x20] sm:$0xff]
    %v131 = vld [vmem:[#allocation8 + $0x28] sm:$0xff]
    %v132 = vld [vmem:[#allocation8 + $0x30] sm:$0xff]
    %v133 = vld [vmem:[#allocation8 + $0x38] sm:$0xff]
    %v134 = vld [vmem:[#allocation8 + $0x40] sm:$0xff]
    %v135 = vld [vmem:[#allocation8 + $0x48] sm:$0xff]
    %v136 = vld [vmem:[#allocation8 + $0x50] sm:$0xff]
    %v137 = vld [vmem:[#allocation8 + $0x58] sm:$0xff]
    %v138 = vld [vmem:[#allocation8 + $0x60] sm:$0xff]
    %v139 = vld [vmem:[#allocation8 + $0x68] sm:$0xff]
    %v140 = vld [vmem:[#allocation8 + $0x70] sm:$0xff]
    %v141 = vld [vmem:[#allocation8 + $0x78] sm:$0xff]
    %v142 = vld [vmem:[%s4] sm:$0x7]
    %s143 = smul.u32 0, 2
    %s144 = smul.addr %s143, 8
    %s145 = scalar_lea.vmem [#allocation2], %s144
    %v146 = vld [vmem:[%s145] sm:$0xff]
    %v147 = vld [vmem:[%s145 + $0x8] sm:$0xff]
    %v148 = vld [vmem:[#allocation5] sm:$0xff]
    %v150 = vlaneseq
    %v151 = vshrl.u32 %v150, 7
    %v152 = vsub.s32 0, %v151
    %v153 = vrot.slane %v142, %v152
    %v154 = vlaneseq
    %v155 = vshrl.u32 %v154, 7
    %v156 = vsub.s32 1, %v155
    %v157 = vrot.slane %v142, %v156
    %v158 = vlaneseq
    %v159 = vshrl.u32 %v158, 7
    %v160 = vsub.s32 2, %v159
    %v161 = vrot.slane %v142, %v160
    %vm165 = vcmask 130048
    %v167 = vsel %vm165, %v147, 0
    %169 = vmatprep.subr.mxu0 %v118
    %170 = vmatpush1.msra.mxu0 %v117
    %171 = vmatprep.subr.mxu0 %v115
    %172 = vmatpush1.msra.mxu0 %v114
    %173 = vmatprep.subr.mxu0 %v112
    %174 = vmatpush1.msra.mxu0 %v111
    %175 = vmatprep.subr.mxu0 %v109
    %176 = vmatpush1.msra.mxu0 %v108
    %177 = vmatprep.subr.mxu0 %v106
    %178 = vmatpush1.msra.mxu0 %v105
    %179 = vmatprep.subr.mxu0 %v103
    %180 = vmatpush1.msra.mxu0 %v102
    %181 = vmatprep.subr.mxu0 %v100
    %182 = vmatpush1.msra.mxu0 %v99
    %183 = vmatprep.subr.mxu0 %v97
    %184 = vmatpush1.msra.mxu0 %v96
    %185 = vmatprep.subr.mxu0 %v94
    %186 = vmatpush1.msra.mxu0 %v93
    %187 = vmatprep.subr.mxu0 %v91
    %188 = vmatpush1.msra.mxu0 %v90
    %189 = vmatprep.subr.mxu0 %v88
    %190 = vmatpush1.msra.mxu0 %v87
    %191 = vmatprep.subr.mxu0 %v85
    %192 = vmatpush1.msra.mxu0 %v84
    %193 = vmatprep.subr.mxu0 %v82
    %194 = vmatpush1.msra.mxu0 %v81
    %195 = vmatprep.subr.mxu0 %v79
    %196 = vmatpush1.msra.mxu0 %v78
    %197 = vmatprep.subr.mxu0 %v76
    %198 = vmatpush1.msra.mxu0 %v75
    %199 = vmatprep.subr.mxu0 %v73
    %200 = vmatpush1.msra.mxu0 %v72
    %201 = vmatprep.subr.mxu0 0.0
    %202 = vmatpush2.msra.mxu0 0.0
    %203 = vmatprep.subr.mxu0 0.0
    %204 = vmatpush2.msra.mxu0 0.0
    %205 = vmatprep.subr.mxu0 0.0
    %206 = vmatpush2.msra.mxu0 0.0
    %207 = vmatprep.subr.mxu0 0.0
    %208 = vmatpush2.msra.mxu0 0.0
    %209 = vmatprep.subr.mxu0 0.0
    %210 = vmatpush2.msra.mxu0 0.0
    %211 = vmatprep.subr.mxu0 0.0
    %212 = vmatpush2.msra.mxu0 0.0
    %213 = vmatprep.subr.mxu0 0.0
    %214 = vmatpush2.msra.mxu0 0.0
    %215 = vmatprep.subr.mxu0 0.0
    %216 = vmatpush2.msra.mxu0 0.0
    %217 = vmatprep.subr.mxu0 0.0
    %218 = vmatpush2.msra.mxu0 0.0
    %219 = vmatprep.subr.mxu0 0.0
    %220 = vmatpush2.msra.mxu0 0.0
    %221 = vmatprep.subr.mxu0 0.0
    %222 = vmatpush2.msra.mxu0 0.0
    %223 = vmatprep.subr.mxu0 0.0
    %224 = vmatpush2.msra.mxu0 0.0
    %225 = vmatprep.subr.mxu0 0.0
    %226 = vmatpush2.msra.mxu0 0.0
    %227 = vmatprep.subr.mxu0 0.0
    %228 = vmatpush2.msra.mxu0 0.0
    %229 = vmatprep.subr.mxu0 %v124
    %230 = vmatpush2.msra.mxu0 %v123
    %231 = vmatprep.subr.mxu0 %v121
    %232 = vmatpush2.msra.mxu0 %v120
    %233 = vmatprep.mubr.f32.mxu0 %v167
    %234 = vmatmul.mubr.f32.gmra.mxu0 %v146
    %v235 = vpop.f32.mrf.mxu0
    %v236 = vadd.f32 %v153, %v235
    %v237 = vpop.f32.mrf.mxu0
    %v238 = vadd.f32 %v157, %v237
    %239 = vdwg.mxu0
    %240 = vmatprep.subr.mxu0 0.0
    %241 = vmatpush1.msra.mxu0 %v119
    %242 = vmatprep.subr.mxu0 0.0
    %243 = vmatpush1.msra.mxu0 %v116
    %244 = vmatprep.subr.mxu0 0.0
    %245 = vmatpush1.msra.mxu0 %v113
    %246 = vmatprep.subr.mxu0 0.0
    %247 = vmatpush1.msra.mxu0 %v110
    %248 = vmatprep.subr.mxu0 0.0
    %249 = vmatpush1.msra.mxu0 %v107
    %250 = vmatprep.subr.mxu0 0.0
    %251 = vmatpush1.msra.mxu0 %v104
    %252 = vmatprep.subr.mxu0 0.0
    %253 = vmatpush1.msra.mxu0 %v101
    %254 = vmatprep.subr.mxu0 0.0
    %255 = vmatpush1.msra.mxu0 %v98
    %256 = vmatprep.subr.mxu0 0.0
    %257 = vmatpush1.msra.mxu0 %v95
    %258 = vmatprep.subr.mxu0 0.0
    %259 = vmatpush1.msra.mxu0 %v92
    %260 = vmatprep.subr.mxu0 0.0
    %261 = vmatpush1.msra.mxu0 %v89
    %262 = vmatprep.subr.mxu0 0.0
    %263 = vmatpush1.msra.mxu0 %v86
    %264 = vmatprep.subr.mxu0 0.0
    %265 = vmatpush1.msra.mxu0 %v83
    %266 = vmatprep.subr.mxu0 0.0
    %267 = vmatpush1.msra.mxu0 %v80
    %268 = vmatprep.subr.mxu0 0.0
    %269 = vmatpush1.msra.mxu0 %v77
    %270 = vmatprep.subr.mxu0 0.0
    %271 = vmatpush1.msra.mxu0 %v74
    %272 = vmatprep.subr.mxu0 0.0
    %273 = vmatpush2.msra.mxu0 0.0
    %274 = vmatprep.subr.mxu0 0.0
    %275 = vmatpush2.msra.mxu0 0.0
    %276 = vmatprep.subr.mxu0 0.0
    %277 = vmatpush2.msra.mxu0 0.0
    %278 = vmatprep.subr.mxu0 0.0
    %279 = vmatpush2.msra.mxu0 0.0
    %280 = vmatprep.subr.mxu0 0.0
    %281 = vmatpush2.msra.mxu0 0.0
    %282 = vmatprep.subr.mxu0 0.0
    %283 = vmatpush2.msra.mxu0 0.0
    %284 = vmatprep.subr.mxu0 0.0
    %285 = vmatpush2.msra.mxu0 0.0
    %286 = vmatprep.subr.mxu0 0.0
    %287 = vmatpush2.msra.mxu0 0.0
    %288 = vmatprep.subr.mxu0 0.0
    %289 = vmatpush2.msra.mxu0 0.0
    %290 = vmatprep.subr.mxu0 0.0
    %291 = vmatpush2.msra.mxu0 0.0
    %292 = vmatprep.subr.mxu0 0.0
    %293 = vmatpush2.msra.mxu0 0.0
    %294 = vmatprep.subr.mxu0 0.0
    %295 = vmatpush2.msra.mxu0 0.0
    %296 = vmatprep.subr.mxu0 0.0
    %297 = vmatpush2.msra.mxu0 0.0
    %298 = vmatprep.subr.mxu0 0.0
    %299 = vmatpush2.msra.mxu0 0.0
    %300 = vmatprep.subr.mxu0 0.0
    %301 = vmatpush2.msra.mxu0 %v125
    %302 = vmatprep.subr.mxu0 0.0
    %303 = vmatpush2.msra.mxu0 %v122
    %304 = vmatprep.mubr.f32.mxu0 %v167
    %305 = vmatmul.mubr.f32.gmra.mxu0 %v146
    %v306 = vpop.f32.mrf.mxu0
    %v307 = vadd.f32 %v161, %v306
    %v308 = vpop.f32.mrf.mxu0
    %309 = vdwg.mxu0
    %v310 = vxor.u32 %v236, 2147483648
    %v311 = vxor.u32 %v238, 2147483648
    %v312 = vmul.f32 %v310, 1.442695
    %v313 = vpow.pop %v312
    %v314 = vmul.f32 %v311, 1.442695
    %v315 = vpow.pop %v314
    %v316 = vadd.f32 %v313, 1.0
    %v317 = vadd.f32 %v315, 1.0
    %v318 = vrcp.pop %v316
    %v319 = vmul.f32 1.0, %v318
    %v320 = vrcp.pop %v317
    %v321 = vmul.f32 1.0, %v320
    %v322 = vmul.f32 %v321, %v148
    %323 = vmatprep.subr.mxu0 0.0
    %324 = vmatpush1.msra.mxu0 %v141
    %325 = vmatprep.subr.mxu0 0.0
    %326 = vmatpush1.msra.mxu0 %v140
    %327 = vmatprep.subr.mxu0 0.0
    %328 = vmatpush1.msra.mxu0 %v139
    %329 = vmatprep.subr.mxu0 0.0
    %330 = vmatpush1.msra.mxu0 %v138
    %331 = vmatprep.subr.mxu0 0.0
    %332 = vmatpush1.msra.mxu0 %v137
    %333 = vmatprep.subr.mxu0 0.0
    %334 = vmatpush1.msra.mxu0 %v136
    %335 = vmatprep.subr.mxu0 0.0
    %336 = vmatpush1.msra.mxu0 %v135
    %337 = vmatprep.subr.mxu0 0.0
    %338 = vmatpush1.msra.mxu0 %v134
    %339 = vmatprep.subr.mxu0 0.0
    %340 = vmatpush1.msra.mxu0 %v133
    %341 = vmatprep.subr.mxu0 0.0
    %342 = vmatpush1.msra.mxu0 %v132
    %343 = vmatprep.subr.mxu0 0.0
    %344 = vmatpush1.msra.mxu0 %v131
    %345 = vmatprep.subr.mxu0 0.0
    %346 = vmatpush1.msra.mxu0 %v130
    %347 = vmatprep.subr.mxu0 0.0
    %348 = vmatpush1.msra.mxu0 %v129
    %349 = vmatprep.subr.mxu0 0.0
    %350 = vmatpush1.msra.mxu0 %v128
    %351 = vmatprep.subr.mxu0 0.0
    %352 = vmatpush1.msra.mxu0 %v127
    %353 = vmatprep.subr.mxu0 0.0
    %354 = vmatpush1.msra.mxu0 %v126
    %355 = vmatprep.subr.mxu0 0.0
    %356 = vmatpush2.msra.mxu0 0.0
    %357 = vmatprep.subr.mxu0 0.0
    %358 = vmatpush2.msra.mxu0 0.0
    %359 = vmatprep.subr.mxu0 0.0
    %360 = vmatpush2.msra.mxu0 0.0
    %361 = vmatprep.subr.mxu0 0.0
    %362 = vmatpush2.msra.mxu0 0.0
    %363 = vmatprep.subr.mxu0 0.0
    %364 = vmatpush2.msra.mxu0 0.0
    %365 = vmatprep.subr.mxu0 0.0
    %366 = vmatpush2.msra.mxu0 0.0
    %367 = vmatprep.subr.mxu0 0.0
    %368 = vmatpush2.msra.mxu0 0.0
    %369 = vmatprep.subr.mxu0 0.0
    %370 = vmatpush2.msra.mxu0 0.0
    %371 = vmatprep.subr.mxu0 0.0
    %372 = vmatpush2.msra.mxu0 0.0
    %373 = vmatprep.subr.mxu0 0.0
    %374 = vmatpush2.msra.mxu0 0.0
    %375 = vmatprep.subr.mxu0 0.0
    %376 = vmatpush2.msra.mxu0 0.0
    %377 = vmatprep.subr.mxu0 0.0
    %378 = vmatpush2.msra.mxu0 0.0
    %379 = vmatprep.subr.mxu0 0.0
    %380 = vmatpush2.msra.mxu0 0.0
    %381 = vmatprep.subr.mxu0 0.0
    %382 = vmatpush2.msra.mxu0 0.0
    %383 = vmatprep.subr.mxu0 0.0
    %384 = vmatpush2.msra.mxu0 0.0
    %385 = vmatprep.subr.mxu0 0.0
    %386 = vmatpush2.msra.mxu0 0.0
    %387 = vmatprep.mubr.f32.mxu0 0.0
    %388 = vmatmul.mubr.f32.gmra.mxu0 %v322
    %v389 = vpop.f32.mrf.mxu0
    %v390 = vadd.f32 0.0, %v389
    %v391 = vpop.f32.mrf.mxu0
    %392 = vdwg.mxu0
    %v393 = vadd.f32 %v307, %v390
    %v394 = vtanh.pop %v393
    %v395 = vsub.f32 1.0, %v319
    %v396 = vmul.f32 %v395, %v148
    %v397 = vmul.f32 %v319, %v394
    %v398 = vadd.f32 %v396, %v397
    %399 = vst [vmem:[#allocation10] sm:$0xff] %v398
    // Predicated region
    $region38: #{tpu_custom_call.1} parent=1 // pred_check
      _
    $region39: #{tpu_custom_call.1} parent=1 // pred_check_branch
      %401 = sbr.rel (0) target = $region41
    $region40: #{tpu_custom_call.1} parent=1 // pred_region
      %s403 = ssub.s32 128, 128
      %404 = vsyncadd [#allocation4], %s403
      %s406 = sshll.u32 [#allocation10], 4
      %s407 = int_to_ptr.vmem [resolvable:$true] %s406
      %409 = dma.vmem_to_hbm [thread:$0]  %s407, 128, %s5, [#allocation4]
    $region41: #{tpu_custom_call.1} parent=1 // pred_fallthru
      _
    // Predicated region
    $region42: #{tpu_custom_call.1} parent=1 // pred_check
      _
    $region43: #{tpu_custom_call.1} parent=1 // pred_check_branch
      %411 = sbr.rel (0) target = $region45
    $region44: #{tpu_custom_call.1} parent=1 // pred_region
      %412 = dma.done [#allocation4], 128
    $region45: #{tpu_custom_call.1} parent=1 // pred_fallthru
      _
    %413 = vsyncpa [#allocation3], 1
    %414 = vsyncpa [#allocation6], 1
    %415 = vsyncpa [#allocation9], 1
    %416 = vsyncpa [#allocation4], 1

// kernel: tpu_custom_call.1
$region0: #{tpu_custom_call.1}
  #allocation0 [shape = 'u32[]', space=smem, size = 0x4, offset = 0x4, fixed_abs, tag = 'smem constant byte address 0x4 - core index']
  #allocation1 [shape = 'u32[144,128]{1,0:T(1,128)}', space=vmem, size = 0x12000, scoped, tag = 'internal scratch']
  %s0 = inlined_call_operand.hbm [shape: f32[8,144], index: 0, kind: input, shape index: {}]
  %s1 = inlined_call_operand.hbm [shape: f32[8,128], index: 1, kind: input, shape index: {}]
  %s2 = inlined_call_operand.hbm [shape: f32[144,384], index: 2, kind: input, shape index: {}]
  %s3 = inlined_call_operand.hbm [shape: f32[128,128], index: 3, kind: input, shape index: {}]
  %s4 = inlined_call_operand.vmem [shape: f32[1,384], index: 4, kind: input, shape index: {}]
  %s5 = inlined_call_operand.hbm [shape: f32[8,128], index: 5, kind: output, shape index: {}]
  %s6 = sld [smem:[#allocation0]]
  $region46: #{tpu_custom_call.1} parent=0
    _
  %s8 = ssub.s32 1, %s6
  %s9 = scalar_select 0, %s8, %s6
  $region1: #{tpu_custom_call.1} parent=0
    #allocation2 [shape = 'u8[8192]{0}', space=vmem, size = 0x2000, scoped, tag = 'input window, operand 0, single buffered']
    #allocation3 [shape = 's32[1]{0}', space=sflag, size = 0x4, scoped, tag = 'scoped memory for tpu_custom_call.1']
    #allocation4 [shape = 's32[1]{0}', space=sflag, size = 0x4, scoped, tag = 'scoped memory for tpu_custom_call.1']
    #allocation5 [shape = 'u8[4096]{0}', space=vmem, size = 0x1000, scoped, tag = 'input window, operand 1, single buffered']
    #allocation6 [shape = 's32[1]{0}', space=sflag, size = 0x4, scoped, tag = 'scoped memory for tpu_custom_call.1']
    #allocation7 [shape = 'u8[221184]{0}', space=vmem, size = 0x36000, scoped, tag = 'input window, operand 2, single buffered']
    #allocation8 [shape = 'u8[65536]{0}', space=vmem, size = 0x10000, scoped, tag = 'input window, operand 3, single buffered']
    #allocation9 [shape = 's32[1]{0}', space=sflag, size = 0x4, scoped, tag = 'scoped memory for tpu_custom_call.1']
    #allocation10 [shape = 'u8[4096]{0}', space=vmem, size = 0x1000, scoped, tag = 'output window, operand 0, single buffered']
    %10 = vsyncpa [#allocation3], 0
    %11 = vsyncpa [#allocation6], 0
    %12 = vsyncpa [#allocation9], 0
    %13 = vsyncpa [#allocation4], 0
    // Predicated region
    $region2: #{tpu_custom_call.1} parent=1 // pred_check
      _
    $region3: #{tpu_custom_call.1} parent=1 // pred_check_branch
      %15 = sbr.rel (0) target = $region5
    $region4: #{tpu_custom_call.1} parent=1 // pred_region
      %s17 = ssub.s32 256, 256
      %18 = vsyncadd [#allocation3], %s17
      %s20 = sshll.u32 [#allocation2], 4
      %s21 = int_to_ptr.vmem [resolvable:$true] %s20
      %23 = dma.hbm_to_vmem [thread:$0]  %s0, 256, %s21, [#allocation3]
    $region5: #{tpu_custom_call.1} parent=1 // pred_fallthru
      _
    // Predicated region
    $region6: #{tpu_custom_call.1} parent=1 // pred_check
      _
    $region7: #{tpu_custom_call.1} parent=1 // pred_check_branch
      %25 = sbr.rel (0) target = $region9
    $region8: #{tpu_custom_call.1} parent=1 // pred_region
      %s27 = ssub.s32 128, 128
      %28 = vsyncadd [#allocation6], %s27
      %s30 = sshll.u32 [#allocation5], 4
      %s31 = int_to_ptr.vmem [resolvable:$true] %s30
      %33 = dma.hbm_to_vmem [thread:$0]  %s1, 128, %s31, [#allocation6]
    $region9: #{tpu_custom_call.1} parent=1 // pred_fallthru
      _
    // Predicated region
    $region10: #{tpu_custom_call.1} parent=1 // pred_check
      _
    $region11: #{tpu_custom_call.1} parent=1 // pred_check_branch
      %35 = sbr.rel (0) target = $region13
    $region12: #{tpu_custom_call.1} parent=1 // pred_region
      %s37 = ssub.s32 6912, 6912
      %38 = vsyncadd [#allocation6], %s37
      %s39 = sshll.u32 [#allocation7], 4
      %s40 = int_to_ptr.vmem [resolvable:$true] %s39
      %45 = dma.hbm_to_vmem [thread:$0]  %s2, 6912, %s40, [#allocation6], 384, 384, 24
    $region13: #{tpu_custom_call.1} parent=1 // pred_fallthru
      _
    // Predicated region
    $region14: #{tpu_custom_call.1} parent=1 // pred_check
      _
    $region15: #{tpu_custom_call.1} parent=1 // pred_check_branch
      %47 = sbr.rel (0) target = $region17
    $region16: #{tpu_custom_call.1} parent=1 // pred_region
      %s49 = ssub.s32 2048, 2048
      %50 = vsyncadd [#allocation9], %s49
      %s51 = sshll.u32 [#allocation8], 4
      %s52 = int_to_ptr.vmem [resolvable:$true] %s51
      %57 = dma.hbm_to_vmem [thread:$0]  %s3, 2048, %s52, [#allocation9], 128, 128, 8
    $region17: #{tpu_custom_call.1} parent=1 // pred_fallthru
      _
    // Predicated region
    $region18: #{tpu_custom_call.1} parent=1 // pred_check
      _
    $region19: #{tpu_custom_call.1} parent=1 // pred_check_branch
      %59 = sbr.rel (0) target = $region21
    $region20: #{tpu_custom_call.1} parent=1 // pred_region
      _
    $region21: #{tpu_custom_call.1} parent=1 // pred_fallthru
      _
    // Predicated region
    $region22: #{tpu_custom_call.1} parent=1 // pred_check
      _
    $region23: #{tpu_custom_call.1} parent=1 // pred_check_branch
      %61 = sbr.rel (0) target = $region25
    $region24: #{tpu_custom_call.1} parent=1 // pred_region
      %62 = dma.done [#allocation3], 256
    $region25: #{tpu_custom_call.1} parent=1 // pred_fallthru
      _
    // Predicated region
    $region26: #{tpu_custom_call.1} parent=1 // pred_check
      _
    $region27: #{tpu_custom_call.1} parent=1 // pred_check_branch
      %64 = sbr.rel (0) target = $region29
    $region28: #{tpu_custom_call.1} parent=1 // pred_region
      %65 = dma.done [#allocation6], 128
    $region29: #{tpu_custom_call.1} parent=1 // pred_fallthru
      _
    // Predicated region
    $region30: #{tpu_custom_call.1} parent=1 // pred_check
      _
    $region31: #{tpu_custom_call.1} parent=1 // pred_check_branch
      %67 = sbr.rel (0) target = $region33
    $region32: #{tpu_custom_call.1} parent=1 // pred_region
      %68 = dma.done [#allocation6], 6912
    $region33: #{tpu_custom_call.1} parent=1 // pred_fallthru
      _
    // Predicated region
    $region34: #{tpu_custom_call.1} parent=1 // pred_check
      _
    $region35: #{tpu_custom_call.1} parent=1 // pred_check_branch
      %70 = sbr.rel (0) target = $region37
    $region36: #{tpu_custom_call.1} parent=1 // pred_region
      %71 = dma.done [#allocation9], 2048
    $region37: #{tpu_custom_call.1} parent=1 // pred_fallthru
      _
    %v72 = vld [vmem:[#allocation7] sm:$0xff]
    %v73 = vld [vmem:[#allocation7 + $0x8] sm:$0xff]
    %v74 = vld [vmem:[#allocation7 + $0x10] sm:$0xff]
    %v75 = vld [vmem:[#allocation7 + $0x18] sm:$0xff]
    %v76 = vld [vmem:[#allocation7 + $0x20] sm:$0xff]
    %v77 = vld [vmem:[#allocation7 + $0x28] sm:$0xff]
    %v78 = vld [vmem:[#allocation7 + $0x30] sm:$0xff]
    %v79 = vld [vmem:[#allocation7 + $0x38] sm:$0xff]
    %v80 = vld [vmem:[#allocation7 + $0x40] sm:$0xff]
    %v81 = vld [vmem:[#allocation7 + $0x48] sm:$0xff]
    %v82 = vld [vmem:[#allocation7 + $0x50] sm:$0xff]
    %v83 = vld [vmem:[#allocation7 + $0x58] sm:$0xff]
    %v84 = vld [vmem:[#allocation7 + $0x60] sm:$0xff]
    %v85 = vld [vmem:[#allocation7 + $0x68] sm:$0xff]
    %v86 = vld [vmem:[#allocation7 + $0x70] sm:$0xff]
    %v87 = vld [vmem:[#allocation7 + $0x78] sm:$0xff]
    %v88 = vld [vmem:[#allocation7 + $0x80] sm:$0xff]
    %v89 = vld [vmem:[#allocation7 + $0x88] sm:$0xff]
    %v90 = vld [vmem:[#allocation7 + $0x90] sm:$0xff]
    %v91 = vld [vmem:[#allocation7 + $0x98] sm:$0xff]
    %v92 = vld [vmem:[#allocation7 + $0xa0] sm:$0xff]
    %v93 = vld [vmem:[#allocation7 + $0xa8] sm:$0xff]
    %v94 = vld [vmem:[#allocation7 + $0xb0] sm:$0xff]
    %v95 = vld [vmem:[#allocation7 + $0xb8] sm:$0xff]
    %v96 = vld [vmem:[#allocation7 + $0xc0] sm:$0xff]
    %v97 = vld [vmem:[#allocation7 + $0xc8] sm:$0xff]
    %v98 = vld [vmem:[#allocation7 + $0xd0] sm:$0xff]
    %v99 = vld [vmem:[#allocation7 + $0xd8] sm:$0xff]
    %v100 = vld [vmem:[#allocation7 + $0xe0] sm:$0xff]
    %v101 = vld [vmem:[#allocation7 + $0xe8] sm:$0xff]
    %v102 = vld [vmem:[#allocation7 + $0xf0] sm:$0xff]
    %v103 = vld [vmem:[#allocation7 + $0xf8] sm:$0xff]
    %v104 = vld [vmem:[#allocation7 + $0x100] sm:$0xff]
    %v105 = vld [vmem:[#allocation7 + $0x108] sm:$0xff]
    %v106 = vld [vmem:[#allocation7 + $0x110] sm:$0xff]
    %v107 = vld [vmem:[#allocation7 + $0x118] sm:$0xff]
    %v108 = vld [vmem:[#allocation7 + $0x120] sm:$0xff]
    %v109 = vld [vmem:[#allocation7 + $0x128] sm:$0xff]
    %v110 = vld [vmem:[#allocation7 + $0x130] sm:$0xff]
    %v111 = vld [vmem:[#allocation7 + $0x138] sm:$0xff]
    %v112 = vld [vmem:[#allocation7 + $0x140] sm:$0xff]
    %v113 = vld [vmem:[#allocation7 + $0x148] sm:$0xff]
    %v114 = vld [vmem:[#allocation7 + $0x150] sm:$0xff]
    %v115 = vld [vmem:[#allocation7 + $0x158] sm:$0xff]
    %v116 = vld [vmem:[#allocation7 + $0x160] sm:$0xff]
    %v117 = vld [vmem:[#allocation7 + $0x168] sm:$0xff]
    %v118 = vld [vmem:[#allocation7 + $0x170] sm:$0xff]
    %v119 = vld [vmem:[#allocation7 + $0x178] sm:$0xff]
    %v120 = vld [vmem:[#allocation7 + $0x180] sm:$0xff]
    %v121 = vld [vmem:[#allocation7 + $0x188] sm:$0xff]
    %v122 = vld [vmem:[#allocation7 + $0x190] sm:$0xff]
    %v123 = vld [vmem:[#allocation7 + $0x198] sm:$0xff]
    %v124 = vld [vmem:[#allocation7 + $0x1a0] sm:$0xff]
    %v125 = vld [vmem:[#allocation7 + $0x1a8] sm:$0xff]
    %v126 = vld [vmem:[#allocation8] sm:$0xff]
    %v127 = vld [vmem:[#allocation8 + $0x8] sm:$0xff]
    %v128 = vld [vmem:[#allocation8 + $0x10] sm:$0xff]
    %v129 = vld [vmem:[#allocation8 + $0x18] sm:$0xff]
    %v130 = vld [vmem:[#allocation8 + $0x20] sm:$0xff]
    %v131 = vld [vmem:[#allocation8 + $0x28] sm:$0xff]
    %v132 = vld [vmem:[#allocation8 + $0x30] sm:$0xff]
    %v133 = vld [vmem:[#allocation8 + $0x38] sm:$0xff]
    %v134 = vld [vmem:[#allocation8 + $0x40] sm:$0xff]
    %v135 = vld [vmem:[#allocation8 + $0x48] sm:$0xff]
    %v136 = vld [vmem:[#allocation8 + $0x50] sm:$0xff]
    %v137 = vld [vmem:[#allocation8 + $0x58] sm:$0xff]
    %v138 = vld [vmem:[#allocation8 + $0x60] sm:$0xff]
    %v139 = vld [vmem:[#allocation8 + $0x68] sm:$0xff]
    %v140 = vld [vmem:[#allocation8 + $0x70] sm:$0xff]
    %v141 = vld [vmem:[#allocation8 + $0x78] sm:$0xff]
    %v142 = vld [vmem:[%s4] sm:$0x7]
    %s143 = smul.u32 0, 2
    %s144 = smul.addr %s143, 8
    %s145 = scalar_lea.vmem [#allocation2], %s144
    %v146 = vld [vmem:[%s145] sm:$0xff]
    %v147 = vld [vmem:[%s145 + $0x8] sm:$0xff]
    %v148 = vld [vmem:[#allocation5] sm:$0xff]
    %v150 = vlaneseq
    %v151 = vshrl.u32 %v150, 7
    %v152 = vsub.s32 0, %v151
    %v153 = vrot.slane %v142, %v152
    %v154 = vlaneseq
    %v155 = vshrl.u32 %v154, 7
    %v156 = vsub.s32 1, %v155
    %v157 = vrot.slane %v142, %v156
    %v158 = vlaneseq
    %v159 = vshrl.u32 %v158, 7
    %v160 = vsub.s32 2, %v159
    %v161 = vrot.slane %v142, %v160
    %vm165 = vcmask 130048
    %v167 = vsel %vm165, %v147, 0
    %169 = vmatprep.subr.mxu0 %v118
    %170 = vmatpush1.msra.mxu0 %v117
    %171 = vmatprep.subr.mxu0 %v115
    %172 = vmatpush1.msra.mxu0 %v114
    %173 = vmatprep.subr.mxu0 %v112
    %174 = vmatpush1.msra.mxu0 %v111
    %175 = vmatprep.subr.mxu0 %v109
    %176 = vmatpush1.msra.mxu0 %v108
    %177 = vmatprep.subr.mxu0 %v106
    %178 = vmatpush1.msra.mxu0 %v105
    %179 = vmatprep.subr.mxu0 %v103
    %180 = vmatpush1.msra.mxu0 %v102
    %181 = vmatprep.subr.mxu0 %v100
    %182 = vmatpush1.msra.mxu0 %v99
    %183 = vmatprep.subr.mxu0 %v97
    %184 = vmatpush1.msra.mxu0 %v96
    %185 = vmatprep.subr.mxu0 %v94
    %186 = vmatpush1.msra.mxu0 %v93
    %187 = vmatprep.subr.mxu0 %v91
    %188 = vmatpush1.msra.mxu0 %v90
    %189 = vmatprep.subr.mxu0 %v88
    %190 = vmatpush1.msra.mxu0 %v87
    %191 = vmatprep.subr.mxu0 %v85
    %192 = vmatpush1.msra.mxu0 %v84
    %193 = vmatprep.subr.mxu0 %v82
    %194 = vmatpush1.msra.mxu0 %v81
    %195 = vmatprep.subr.mxu0 %v79
    %196 = vmatpush1.msra.mxu0 %v78
    %197 = vmatprep.subr.mxu0 %v76
    %198 = vmatpush1.msra.mxu0 %v75
    %199 = vmatprep.subr.mxu0 %v73
    %200 = vmatpush1.msra.mxu0 %v72
    %201 = vmatprep.subr.mxu0 0.0
    %202 = vmatpush2.msra.mxu0 0.0
    %203 = vmatprep.subr.mxu0 0.0
    %204 = vmatpush2.msra.mxu0 0.0
    %205 = vmatprep.subr.mxu0 0.0
    %206 = vmatpush2.msra.mxu0 0.0
    %207 = vmatprep.subr.mxu0 0.0
    %208 = vmatpush2.msra.mxu0 0.0
    %209 = vmatprep.subr.mxu0 0.0
    %210 = vmatpush2.msra.mxu0 0.0
    %211 = vmatprep.subr.mxu0 0.0
    %212 = vmatpush2.msra.mxu0 0.0
    %213 = vmatprep.subr.mxu0 0.0
    %214 = vmatpush2.msra.mxu0 0.0
    %215 = vmatprep.subr.mxu0 0.0
    %216 = vmatpush2.msra.mxu0 0.0
    %217 = vmatprep.subr.mxu0 0.0
    %218 = vmatpush2.msra.mxu0 0.0
    %219 = vmatprep.subr.mxu0 0.0
    %220 = vmatpush2.msra.mxu0 0.0
    %221 = vmatprep.subr.mxu0 0.0
    %222 = vmatpush2.msra.mxu0 0.0
    %223 = vmatprep.subr.mxu0 0.0
    %224 = vmatpush2.msra.mxu0 0.0
    %225 = vmatprep.subr.mxu0 0.0
    %226 = vmatpush2.msra.mxu0 0.0
    %227 = vmatprep.subr.mxu0 0.0
    %228 = vmatpush2.msra.mxu0 0.0
    %229 = vmatprep.subr.mxu0 %v124
    %230 = vmatpush2.msra.mxu0 %v123
    %231 = vmatprep.subr.mxu0 %v121
    %232 = vmatpush2.msra.mxu0 %v120
    %233 = vmatprep.mubr.f32.mxu0 %v167
    %234 = vmatmul.mubr.f32.gmra.mxu0 %v146
    %v235 = vpop.f32.mrf.mxu0
    %v236 = vadd.f32 %v153, %v235
    %v237 = vpop.f32.mrf.mxu0
    %v238 = vadd.f32 %v157, %v237
    %239 = vdwg.mxu0
    %240 = vmatprep.subr.mxu0 0.0
    %241 = vmatpush1.msra.mxu0 %v119
    %242 = vmatprep.subr.mxu0 0.0
    %243 = vmatpush1.msra.mxu0 %v116
    %244 = vmatprep.subr.mxu0 0.0
    %245 = vmatpush1.msra.mxu0 %v113
    %246 = vmatprep.subr.mxu0 0.0
    %247 = vmatpush1.msra.mxu0 %v110
    %248 = vmatprep.subr.mxu0 0.0
    %249 = vmatpush1.msra.mxu0 %v107
    %250 = vmatprep.subr.mxu0 0.0
    %251 = vmatpush1.msra.mxu0 %v104
    %252 = vmatprep.subr.mxu0 0.0
    %253 = vmatpush1.msra.mxu0 %v101
    %254 = vmatprep.subr.mxu0 0.0
    %255 = vmatpush1.msra.mxu0 %v98
    %256 = vmatprep.subr.mxu0 0.0
    %257 = vmatpush1.msra.mxu0 %v95
    %258 = vmatprep.subr.mxu0 0.0
    %259 = vmatpush1.msra.mxu0 %v92
    %260 = vmatprep.subr.mxu0 0.0
    %261 = vmatpush1.msra.mxu0 %v89
    %262 = vmatprep.subr.mxu0 0.0
    %263 = vmatpush1.msra.mxu0 %v86
    %264 = vmatprep.subr.mxu0 0.0
    %265 = vmatpush1.msra.mxu0 %v83
    %266 = vmatprep.subr.mxu0 0.0
    %267 = vmatpush1.msra.mxu0 %v80
    %268 = vmatprep.subr.mxu0 0.0
    %269 = vmatpush1.msra.mxu0 %v77
    %270 = vmatprep.subr.mxu0 0.0
    %271 = vmatpush1.msra.mxu0 %v74
    %272 = vmatprep.subr.mxu0 0.0
    %273 = vmatpush2.msra.mxu0 0.0
    %274 = vmatprep.subr.mxu0 0.0
    %275 = vmatpush2.msra.mxu0 0.0
    %276 = vmatprep.subr.mxu0 0.0
    %277 = vmatpush2.msra.mxu0 0.0
    %278 = vmatprep.subr.mxu0 0.0
    %279 = vmatpush2.msra.mxu0 0.0
    %280 = vmatprep.subr.mxu0 0.0
    %281 = vmatpush2.msra.mxu0 0.0
    %282 = vmatprep.subr.mxu0 0.0
    %283 = vmatpush2.msra.mxu0 0.0
    %284 = vmatprep.subr.mxu0 0.0
    %285 = vmatpush2.msra.mxu0 0.0
    %286 = vmatprep.subr.mxu0 0.0
    %287 = vmatpush2.msra.mxu0 0.0
    %288 = vmatprep.subr.mxu0 0.0
    %289 = vmatpush2.msra.mxu0 0.0
    %290 = vmatprep.subr.mxu0 0.0
    %291 = vmatpush2.msra.mxu0 0.0
    %292 = vmatprep.subr.mxu0 0.0
    %293 = vmatpush2.msra.mxu0 0.0
    %294 = vmatprep.subr.mxu0 0.0
    %295 = vmatpush2.msra.mxu0 0.0
    %296 = vmatprep.subr.mxu0 0.0
    %297 = vmatpush2.msra.mxu0 0.0
    %298 = vmatprep.subr.mxu0 0.0
    %299 = vmatpush2.msra.mxu0 0.0
    %300 = vmatprep.subr.mxu0 0.0
    %301 = vmatpush2.msra.mxu0 %v125
    %302 = vmatprep.subr.mxu0 0.0
    %303 = vmatpush2.msra.mxu0 %v122
    %304 = vmatprep.mubr.f32.mxu0 %v167
    %305 = vmatmul.mubr.f32.gmra.mxu0 %v146
    %v306 = vpop.f32.mrf.mxu0
    %v307 = vadd.f32 %v161, %v306
    %v308 = vpop.f32.mrf.mxu0
    %309 = vdwg.mxu0
    %v310 = vxor.u32 %v236, 2147483648
    %v311 = vxor.u32 %v238, 2147483648
    %v312 = vmul.f32 %v310, 1.442695
    %v313 = vpow.pop %v312
    %v314 = vmul.f32 %v311, 1.442695
    %v315 = vpow.pop %v314
    %v316 = vadd.f32 %v313, 1.0
    %v317 = vadd.f32 %v315, 1.0
    %v318 = vrcp.pop %v316
    %v319 = vmul.f32 1.0, %v318
    %v320 = vrcp.pop %v317
    %v321 = vmul.f32 1.0, %v320
    %v322 = vmul.f32 %v321, %v148
    %323 = vmatprep.subr.mxu0 0.0
    %324 = vmatpush1.msra.mxu0 %v141
    %325 = vmatprep.subr.mxu0 0.0
    %326 = vmatpush1.msra.mxu0 %v140
    %327 = vmatprep.subr.mxu0 0.0
    %328 = vmatpush1.msra.mxu0 %v139
    %329 = vmatprep.subr.mxu0 0.0
    %330 = vmatpush1.msra.mxu0 %v138
    %331 = vmatprep.subr.mxu0 0.0
    %332 = vmatpush1.msra.mxu0 %v137
    %333 = vmatprep.subr.mxu0 0.0
    %334 = vmatpush1.msra.mxu0 %v136
    %335 = vmatprep.subr.mxu0 0.0
    %336 = vmatpush1.msra.mxu0 %v135
    %337 = vmatprep.subr.mxu0 0.0
    %338 = vmatpush1.msra.mxu0 %v134
    %339 = vmatprep.subr.mxu0 0.0
    %340 = vmatpush1.msra.mxu0 %v133
    %341 = vmatprep.subr.mxu0 0.0
    %342 = vmatpush1.msra.mxu0 %v132
    %343 = vmatprep.subr.mxu0 0.0
    %344 = vmatpush1.msra.mxu0 %v131
    %345 = vmatprep.subr.mxu0 0.0
    %346 = vmatpush1.msra.mxu0 %v130
    %347 = vmatprep.subr.mxu0 0.0
    %348 = vmatpush1.msra.mxu0 %v129
    %349 = vmatprep.subr.mxu0 0.0
    %350 = vmatpush1.msra.mxu0 %v128
    %351 = vmatprep.subr.mxu0 0.0
    %352 = vmatpush1.msra.mxu0 %v127
    %353 = vmatprep.subr.mxu0 0.0
    %354 = vmatpush1.msra.mxu0 %v126
    %355 = vmatprep.subr.mxu0 0.0
    %356 = vmatpush2.msra.mxu0 0.0
    %357 = vmatprep.subr.mxu0 0.0
    %358 = vmatpush2.msra.mxu0 0.0
    %359 = vmatprep.subr.mxu0 0.0
    %360 = vmatpush2.msra.mxu0 0.0
    %361 = vmatprep.subr.mxu0 0.0
    %362 = vmatpush2.msra.mxu0 0.0
    %363 = vmatprep.subr.mxu0 0.0
    %364 = vmatpush2.msra.mxu0 0.0
    %365 = vmatprep.subr.mxu0 0.0
    %366 = vmatpush2.msra.mxu0 0.0
    %367 = vmatprep.subr.mxu0 0.0
    %368 = vmatpush2.msra.mxu0 0.0
    %369 = vmatprep.subr.mxu0 0.0
    %370 = vmatpush2.msra.mxu0 0.0
    %371 = vmatprep.subr.mxu0 0.0
    %372 = vmatpush2.msra.mxu0 0.0
    %373 = vmatprep.subr.mxu0 0.0
    %374 = vmatpush2.msra.mxu0 0.0
    %375 = vmatprep.subr.mxu0 0.0
    %376 = vmatpush2.msra.mxu0 0.0
    %377 = vmatprep.subr.mxu0 0.0
    %378 = vmatpush2.msra.mxu0 0.0
    %379 = vmatprep.subr.mxu0 0.0
    %380 = vmatpush2.msra.mxu0 0.0
    %381 = vmatprep.subr.mxu0 0.0
    %382 = vmatpush2.msra.mxu0 0.0
    %383 = vmatprep.subr.mxu0 0.0
    %384 = vmatpush2.msra.mxu0 0.0
    %385 = vmatprep.subr.mxu0 0.0
    %386 = vmatpush2.msra.mxu0 0.0
    %387 = vmatprep.mubr.f32.mxu0 0.0
    %388 = vmatmul.mubr.f32.gmra.mxu0 %v322
    %v389 = vpop.f32.mrf.mxu0
    %v390 = vadd.f32 0.0, %v389
    %v391 = vpop.f32.mrf.mxu0
    %392 = vdwg.mxu0
    %v393 = vadd.f32 %v307, %v390
    %v394 = vtanh.pop %v393
    %v395 = vsub.f32 1.0, %v319
    %v396 = vmul.f32 %v395, %v148
    %v397 = vmul.f32 %v319, %v394
    %v398 = vadd.f32 %v396, %v397
    %399 = vst [vmem:[#allocation10] sm:$0xff] %v398
    // Predicated region
    $region38: #{tpu_custom_call.1} parent=1 // pred_check
      _
    $region39: #{tpu_custom_call.1} parent=1 // pred_check_branch
      %401 = sbr.rel (0) target = $region41
    $region40: #{tpu_custom_call.1} parent=1 // pred_region
      %s403 = ssub.s32 128, 128
      %404 = vsyncadd [#allocation4], %s403
      %s406 = sshll.u32 [#allocation10], 4
      %s407 = int_to_ptr.vmem [resolvable:$true] %s406
      %409 = dma.vmem_to_hbm [thread:$0]  %s407, 128, %s5, [#allocation4]
    $region41: #{tpu_custom_call.1} parent=1 // pred_fallthru
      _
    // Predicated region
    $region42: #{tpu_custom_call.1} parent=1 // pred_check
      _
    $region43: #{tpu_custom_call.1} parent=1 // pred_check_branch
      %411 = sbr.rel (0) target = $region45
    $region44: #{tpu_custom_call.1} parent=1 // pred_region
      %412 = dma.done [#allocation4], 128
    $region45: #{tpu_custom_call.1} parent=1 // pred_fallthru
      _
    %413 = vsyncpa [#allocation3], 1
    %414 = vsyncpa [#allocation6], 1
    %415 = vsyncpa [#allocation9], 1
    %416 = vsyncpa [#allocation4], 1

</llo_original>
